<compile_context>
chip_gen: v7x
topology: tpu7x:2x2x1
jax: 0.10.0
libtpu: 0.0.40
codegen_flags: <defaults>
</compile_context>

<pallas_src>
import functools

import jax
import jax.numpy as jnp
from jax import lax
from jax.experimental import pallas as pl
from jax.experimental.pallas import tpu as pltpu

MARGIN = 1.0
EPS = 1e-6  # nn.PairwiseDistance default eps (added to the difference)


def _triplet_kernel(a1, p1, n1, a2, p2, n2, a3, p3, n3, out_ref,
                    *, total_rows, tile_rows):
    """Nine (TB, D) input tiles; out_ref is a lane-dense (1, 8, 128) partial-sum slab."""
    f32 = jnp.float32

    def pdist(anchor_f32, other_ref):
        d = anchor_f32 - other_ref[...].astype(f32) + EPS
        # TODO(synk): if D is tiny (<128) a (D, B) layout (reduce over sublanes)
        # would raise lane density; kept (B, D) to match the PyTorch convention.
        return jnp.sqrt(jnp.sum(d * d, axis=-1, keepdims=True))  # (TB, 1)

    # Hoist anchor loads: each anchor tile read/cast once, reused for both distances.
    a1f = a1[...].astype(f32)
    a2f = a2[...].astype(f32)
    a3f = a3[...].astype(f32)

    l1 = jnp.maximum(pdist(a1f, p1) - pdist(a1f, n1) + MARGIN, 0.0)
    l2 = jnp.maximum(pdist(a2f, p2) - pdist(a2f, n2) + MARGIN, 0.0)
    l3 = jnp.maximum(pdist(a3f, p3) - pdist(a3f, n3) + MARGIN, 0.0)
    total = l1 + l2 + l3  # (TB, 1) per-row loss

    # Mask rows that belong to batch padding (only emitted if padding exists).
    if total_rows % tile_rows != 0:
        rows = (pl.program_id(0) * tile_rows
                + lax.broadcasted_iota(jnp.int32, (tile_rows, 1), 0))
        total = jnp.where(rows < total_rows, total, 0.0)

    partial = jnp.sum(total)  # scalar partial sum for this tile
    out_ref[...] = jnp.broadcast_to(partial, out_ref.shape)


def _choose_tile_rows(batch, feat, itemsize, vmem_budget_bytes=40 * 1024 * 1024):
    """Largest row-tile (multiple of 8) whose 9-stream double-buffer fits the budget."""
    max_rows = max(8, vmem_budget_bytes // (9 * 2 * feat * itemsize))
    tb = min(1024, max_rows, ((batch + 7) // 8) * 8)
    return max(8, (tb // 8) * 8)


def triplet_loss(anchor_out, positive_out, negative_out):
    """anchor_out / positive_out / negative_out: tuples of three (B, D) arrays."""
    a1, a2, a3 = anchor_out
    p1, p2, p3 = positive_out
    n1, n2, n3 = negative_out
    args = (a1, p1, n1, a2, p2, n2, a3, p3, n3)

    B, D = a1.shape
    itemsize = jnp.dtype(a1.dtype).itemsize
    tb = _choose_tile_rows(B, D, itemsize)
    num_tiles = pl.cdiv(B, tb)
    b_pad = num_tiles * tb

    if b_pad != B:
        args = tuple(jnp.pad(x, ((0, b_pad - B), (0, 0))) for x in args)

    in_spec = pl.BlockSpec((tb, D), lambda i: (i, 0))
    out_spec = pl.BlockSpec((1, 8, 128), lambda i: (i, 0, 0))

    # 9 inputs x 2 pipeline buffers x tile, plus the tiny partial-sum output.
    vmem_needed = 9 * 2 * tb * D * itemsize + 2 * 8 * 128 * 4
    vmem_limit = int(min(max(vmem_needed + (8 << 20), 32 << 20), 64 << 20))

    cost = pl.CostEstimate(
        flops=int(9 * B * D * 3 + 12 * B),
        transcendentals=int(6 * B),
        bytes_accessed=int(9 * b_pad * D * itemsize + num_tiles * 8 * 128 * 4),
    )

    kernel = functools.partial(_triplet_kernel, total_rows=B, tile_rows=tb)

    partials = pl.pallas_call(
        kernel,
        out_shape=jax.ShapeDtypeStruct((num_tiles, 8, 128), jnp.float32),
        grid=(num_tiles,),
        in_specs=[in_spec] * len(args),
        out_specs=out_spec,
        compiler_params=pltpu.CompilerParams(
            dimension_semantics=("parallel",),
            vmem_limit_bytes=vmem_limit,
        ),
        cost_estimate=cost,
    )(*args)

    # Final mean over the TRUE batch size (padded rows were masked in-kernel).
    return jnp.sum(partials[:, 0, 0]) / B


def _reference(anchor_out, positive_out, negative_out):
    def pdist(x, y):
        d = x.astype(jnp.float32) - y.astype(jnp.float32) + EPS
        return jnp.sqrt(jnp.sum(d * d, axis=-1))

    (a1, a2, a3), (p1, p2, p3), (n1, n2, n3) = anchor_out, positive_out, negative_out
    l1 = jnp.maximum(pdist(a1, p1) - pdist(a1, n1) + MARGIN, 0.0)
    l2 = jnp.maximum(pdist(a2, p2) - pdist(a2, n2) + MARGIN, 0.0)
    l3 = jnp.maximum(pdist(a3, p3) - pdist(a3, n3) + MARGIN, 0.0)
    return jnp.mean(l1 + l2 + l3)


if __name__ == "__main__":
    key = jax.random.PRNGKey(0)

    # Two small configs: exact-tile batch and a ragged batch (exercises pad+mask).
    for B, D in ((8, 32), (13, 32)):
        keys = jax.random.split(key, 9)
        anchors = tuple(jax.random.normal(keys[i], (B, D), dtype=jnp.float32) for i in range(3))
        positives = tuple(jax.random.normal(keys[3 + i], (B, D), dtype=jnp.float32) for i in range(3))
        negatives = tuple(jax.random.normal(keys[6 + i], (B, D), dtype=jnp.float32) for i in range(3))

        loss = triplet_loss(anchors, positives, negatives)
        jax.block_until_ready(loss)

        ref = _reference(anchors, positives, negatives)
        assert jnp.allclose(loss, ref, rtol=1e-5, atol=1e-5), (B, D, loss, ref)

    print("KERNEL_OK")
</pallas_src>

<mosaic_0001>
module attributes {stable_mosaic.version = 11 : i64} {
  func.func @_triplet_kernel(%arg0: i32, %arg1: memref<8x32xf32, #tpu.memory_space<vmem>>, %arg2: memref<8x32xf32, #tpu.memory_space<vmem>>, %arg3: memref<8x32xf32, #tpu.memory_space<vmem>>, %arg4: memref<8x32xf32, #tpu.memory_space<vmem>>, %arg5: memref<8x32xf32, #tpu.memory_space<vmem>>, %arg6: memref<8x32xf32, #tpu.memory_space<vmem>>, %arg7: memref<8x32xf32, #tpu.memory_space<vmem>>, %arg8: memref<8x32xf32, #tpu.memory_space<vmem>>, %arg9: memref<8x32xf32, #tpu.memory_space<vmem>>, %arg10: memref<1x8x128xf32, #tpu.memory_space<vmem>>) attributes {dimension_semantics = [#tpu.dimension_semantics<parallel>], iteration_bounds = array<i64: 1>, scalar_prefetch = 0 : i64, scratch_operands = 0 : i64, tpu.core_type = #tpu.core_type<tc>, window_params = [{transform_indices = @transform_0, window_bounds = array<i64: 8, 32>}, {transform_indices = @transform_1, window_bounds = array<i64: 8, 32>}, {transform_indices = @transform_2, window_bounds = array<i64: 8, 32>}, {transform_indices = @transform_3, window_bounds = array<i64: 8, 32>}, {transform_indices = @transform_4, window_bounds = array<i64: 8, 32>}, {transform_indices = @transform_5, window_bounds = array<i64: 8, 32>}, {transform_indices = @transform_6, window_bounds = array<i64: 8, 32>}, {transform_indices = @transform_7, window_bounds = array<i64: 8, 32>}, {transform_indices = @transform_8, window_bounds = array<i64: 8, 32>}, {transform_indices = @transform_9, window_bounds = array<i64: 1, 8, 128>}]} {
    %c0 = arith.constant 0 : index
    %c0_0 = arith.constant 0 : index
    %0 = vector.load %arg1[%c0, %c0_0] : memref<8x32xf32, #tpu.memory_space<vmem>>, vector<8x32xf32>
    %c0_1 = arith.constant 0 : index
    %c0_2 = arith.constant 0 : index
    %1 = vector.load %arg4[%c0_1, %c0_2] : memref<8x32xf32, #tpu.memory_space<vmem>>, vector<8x32xf32>
    %c0_3 = arith.constant 0 : index
    %c0_4 = arith.constant 0 : index
    %2 = vector.load %arg7[%c0_3, %c0_4] : memref<8x32xf32, #tpu.memory_space<vmem>>, vector<8x32xf32>
    %c0_5 = arith.constant 0 : index
    %c0_6 = arith.constant 0 : index
    %3 = vector.load %arg2[%c0_5, %c0_6] : memref<8x32xf32, #tpu.memory_space<vmem>>, vector<8x32xf32>
    %4 = arith.subf %0, %3 : vector<8x32xf32>
    %cst = arith.constant 9.99999997E-7 : f32
    %5 = vector.broadcast %cst : f32 to vector<8x32xf32>
    %6 = arith.addf %4, %5 : vector<8x32xf32>
    %7 = arith.mulf %6, %6 : vector<8x32xf32>
    %cst_7 = arith.constant dense<0.000000e+00> : vector<8xf32>
    %8 = vector.multi_reduction <add>, %7, %cst_7 [1] : vector<8x32xf32> to vector<8xf32>
    %9 = vector.shape_cast %8 : vector<8xf32> to vector<8x1xf32>
    %10 = math.sqrt %9 : vector<8x1xf32>
    %c0_8 = arith.constant 0 : index
    %c0_9 = arith.constant 0 : index
    %11 = vector.load %arg3[%c0_8, %c0_9] : memref<8x32xf32, #tpu.memory_space<vmem>>, vector<8x32xf32>
    %12 = arith.subf %0, %11 : vector<8x32xf32>
    %cst_10 = arith.constant 9.99999997E-7 : f32
    %13 = vector.broadcast %cst_10 : f32 to vector<8x32xf32>
    %14 = arith.addf %12, %13 : vector<8x32xf32>
    %15 = arith.mulf %14, %14 : vector<8x32xf32>
    %cst_11 = arith.constant dense<0.000000e+00> : vector<8xf32>
    %16 = vector.multi_reduction <add>, %15, %cst_11 [1] : vector<8x32xf32> to vector<8xf32>
    %17 = vector.shape_cast %16 : vector<8xf32> to vector<8x1xf32>
    %18 = math.sqrt %17 : vector<8x1xf32>
    %19 = arith.subf %10, %18 : vector<8x1xf32>
    %cst_12 = arith.constant 1.000000e+00 : f32
    %20 = vector.broadcast %cst_12 : f32 to vector<8x1xf32>
    %21 = arith.addf %19, %20 : vector<8x1xf32>
    %cst_13 = arith.constant 0.000000e+00 : f32
    %22 = vector.broadcast %cst_13 : f32 to vector<8x1xf32>
    %23 = arith.maximumf %21, %22 : vector<8x1xf32>
    %c0_14 = arith.constant 0 : index
    %c0_15 = arith.constant 0 : index
    %24 = vector.load %arg5[%c0_14, %c0_15] : memref<8x32xf32, #tpu.memory_space<vmem>>, vector<8x32xf32>
    %25 = arith.subf %1, %24 : vector<8x32xf32>
    %cst_16 = arith.constant 9.99999997E-7 : f32
    %26 = vector.broadcast %cst_16 : f32 to vector<8x32xf32>
    %27 = arith.addf %25, %26 : vector<8x32xf32>
    %28 = arith.mulf %27, %27 : vector<8x32xf32>
    %cst_17 = arith.constant dense<0.000000e+00> : vector<8xf32>
    %29 = vector.multi_reduction <add>, %28, %cst_17 [1] : vector<8x32xf32> to vector<8xf32>
    %30 = vector.shape_cast %29 : vector<8xf32> to vector<8x1xf32>
    %31 = math.sqrt %30 : vector<8x1xf32>
    %c0_18 = arith.constant 0 : index
    %c0_19 = arith.constant 0 : index
    %32 = vector.load %arg6[%c0_18, %c0_19] : memref<8x32xf32, #tpu.memory_space<vmem>>, vector<8x32xf32>
    %33 = arith.subf %1, %32 : vector<8x32xf32>
    %cst_20 = arith.constant 9.99999997E-7 : f32
    %34 = vector.broadcast %cst_20 : f32 to vector<8x32xf32>
    %35 = arith.addf %33, %34 : vector<8x32xf32>
    %36 = arith.mulf %35, %35 : vector<8x32xf32>
    %cst_21 = arith.constant dense<0.000000e+00> : vector<8xf32>
    %37 = vector.multi_reduction <add>, %36, %cst_21 [1] : vector<8x32xf32> to vector<8xf32>
    %38 = vector.shape_cast %37 : vector<8xf32> to vector<8x1xf32>
    %39 = math.sqrt %38 : vector<8x1xf32>
    %40 = arith.subf %31, %39 : vector<8x1xf32>
    %cst_22 = arith.constant 1.000000e+00 : f32
    %41 = vector.broadcast %cst_22 : f32 to vector<8x1xf32>
    %42 = arith.addf %40, %41 : vector<8x1xf32>
    %cst_23 = arith.constant 0.000000e+00 : f32
    %43 = vector.broadcast %cst_23 : f32 to vector<8x1xf32>
    %44 = arith.maximumf %42, %43 : vector<8x1xf32>
    %c0_24 = arith.constant 0 : index
    %c0_25 = arith.constant 0 : index
    %45 = vector.load %arg8[%c0_24, %c0_25] : memref<8x32xf32, #tpu.memory_space<vmem>>, vector<8x32xf32>
    %46 = arith.subf %2, %45 : vector<8x32xf32>
    %cst_26 = arith.constant 9.99999997E-7 : f32
    %47 = vector.broadcast %cst_26 : f32 to vector<8x32xf32>
    %48 = arith.addf %46, %47 : vector<8x32xf32>
    %49 = arith.mulf %48, %48 : vector<8x32xf32>
    %cst_27 = arith.constant dense<0.000000e+00> : vector<8xf32>
    %50 = vector.multi_reduction <add>, %49, %cst_27 [1] : vector<8x32xf32> to vector<8xf32>
    %51 = vector.shape_cast %50 : vector<8xf32> to vector<8x1xf32>
    %52 = math.sqrt %51 : vector<8x1xf32>
    %c0_28 = arith.constant 0 : index
    %c0_29 = arith.constant 0 : index
    %53 = vector.load %arg9[%c0_28, %c0_29] : memref<8x32xf32, #tpu.memory_space<vmem>>, vector<8x32xf32>
    %54 = arith.subf %2, %53 : vector<8x32xf32>
    %cst_30 = arith.constant 9.99999997E-7 : f32
    %55 = vector.broadcast %cst_30 : f32 to vector<8x32xf32>
    %56 = arith.addf %54, %55 : vector<8x32xf32>
    %57 = arith.mulf %56, %56 : vector<8x32xf32>
    %cst_31 = arith.constant dense<0.000000e+00> : vector<8xf32>
    %58 = vector.multi_reduction <add>, %57, %cst_31 [1] : vector<8x32xf32> to vector<8xf32>
    %59 = vector.shape_cast %58 : vector<8xf32> to vector<8x1xf32>
    %60 = math.sqrt %59 : vector<8x1xf32>
    %61 = arith.subf %52, %60 : vector<8x1xf32>
    %cst_32 = arith.constant 1.000000e+00 : f32
    %62 = vector.broadcast %cst_32 : f32 to vector<8x1xf32>
    %63 = arith.addf %61, %62 : vector<8x1xf32>
    %cst_33 = arith.constant 0.000000e+00 : f32
    %64 = vector.broadcast %cst_33 : f32 to vector<8x1xf32>
    %65 = arith.maximumf %63, %64 : vector<8x1xf32>
    %66 = arith.addf %23, %44 : vector<8x1xf32>
    %67 = arith.addf %66, %65 : vector<8x1xf32>
    %68 = vector.shape_cast %67 : vector<8x1xf32> to vector<1x8x1xf32>
    %cst_34 = arith.constant dense<0.000000e+00> : vector<1xf32>
    %69 = vector.multi_reduction <add>, %68, %cst_34 [1, 2] : vector<1x8x1xf32> to vector<1xf32>
    %70 = vector.shape_cast %69 : vector<1xf32> to vector<1x1x1xf32>
    %71 = vector.extract %70[0, 0, 0] : f32 from vector<1x1x1xf32>
    %72 = vector.broadcast %71 : f32 to vector<1x8x128xf32>
    %c0_35 = arith.constant 0 : index
    %c0_36 = arith.constant 0 : index
    %c0_37 = arith.constant 0 : index
    %73 = vector.load %arg10[%c0_35, %c0_36, %c0_37] : memref<1x8x128xf32, #tpu.memory_space<vmem>>, vector<1x8x128xf32>
    tpu.vector_store %arg10[%c0_35, %c0_36, %c0_37], %72 {strides = array<i32>} : memref<1x8x128xf32, #tpu.memory_space<vmem>>, vector<1x8x128xf32>,
    return
  }
  func.func @transform_0(%arg0: i32) -> (i32, i32) {
    %c0_i32 = arith.constant 0 : i32
    %c0_i32_0 = arith.constant 0 : i32
    return %arg0, %c0_i32 : i32, i32
  }
  func.func @transform_1(%arg0: i32) -> (i32, i32) {
    %c0_i32 = arith.constant 0 : i32
    %c0_i32_0 = arith.constant 0 : i32
    return %arg0, %c0_i32 : i32, i32
  }
  func.func @transform_2(%arg0: i32) -> (i32, i32) {
    %c0_i32 = arith.constant 0 : i32
    %c0_i32_0 = arith.constant 0 : i32
    return %arg0, %c0_i32 : i32, i32
  }
  func.func @transform_3(%arg0: i32) -> (i32, i32) {
    %c0_i32 = arith.constant 0 : i32
    %c0_i32_0 = arith.constant 0 : i32
    return %arg0, %c0_i32 : i32, i32
  }
  func.func @transform_4(%arg0: i32) -> (i32, i32) {
    %c0_i32 = arith.constant 0 : i32
    %c0_i32_0 = arith.constant 0 : i32
    return %arg0, %c0_i32 : i32, i32
  }
  func.func @transform_5(%arg0: i32) -> (i32, i32) {
    %c0_i32 = arith.constant 0 : i32
    %c0_i32_0 = arith.constant 0 : i32
    return %arg0, %c0_i32 : i32, i32
  }
  func.func @transform_6(%arg0: i32) -> (i32, i32) {
    %c0_i32 = arith.constant 0 : i32
    %c0_i32_0 = arith.constant 0 : i32
    return %arg0, %c0_i32 : i32, i32
  }
  func.func @transform_7(%arg0: i32) -> (i32, i32) {
    %c0_i32 = arith.constant 0 : i32
    %c0_i32_0 = arith.constant 0 : i32
    return %arg0, %c0_i32 : i32, i32
  }
  func.func @transform_8(%arg0: i32) -> (i32, i32) {
    %c0_i32 = arith.constant 0 : i32
    %c0_i32_0 = arith.constant 0 : i32
    return %arg0, %c0_i32 : i32, i32
  }
  func.func @transform_9(%arg0: i32) -> (i32, i32, i32) {
    %c0_i32 = arith.constant 0 : i32
    %c0_i32_0 = arith.constant 0 : i32
    %c0_i32_1 = arith.constant 0 : i32
    return %arg0, %c0_i32, %c0_i32_0 : i32, i32, i32
  }
}

</mosaic_0001>

<llo_original>
// kernel: tpu_custom_call.1
$region0: #{tpu_custom_call.1}
  #allocation0 [shape = 'u32[]', space=smem, size = 0x4, offset = 0x4, fixed_abs, tag = 'smem constant byte address 0x4 - core index']
  #allocation1 [shape = 'u32[144,128]{1,0:T(1,128)}', space=vmem, size = 0x12000, scoped, tag = 'internal scratch']
  %s0 = inlined_call_operand.hbm [shape: f32[8,32], index: 0, kind: input, shape index: {}]
  %s1 = inlined_call_operand.hbm [shape: f32[8,32], index: 1, kind: input, shape index: {}]
  %s2 = inlined_call_operand.hbm [shape: f32[8,32], index: 2, kind: input, shape index: {}]
  %s3 = inlined_call_operand.vmem [shape: f32[8,32], index: 3, kind: input, shape index: {}]
  %s4 = inlined_call_operand.hbm [shape: f32[8,32], index: 4, kind: input, shape index: {}]
  %s5 = inlined_call_operand.vmem [shape: f32[8,32], index: 5, kind: input, shape index: {}]
  %s6 = inlined_call_operand.hbm [shape: f32[8,32], index: 6, kind: input, shape index: {}]
  %s7 = inlined_call_operand.vmem [shape: f32[8,32], index: 7, kind: input, shape index: {}]
  %s8 = inlined_call_operand.hbm [shape: f32[8,32], index: 8, kind: input, shape index: {}]
  %s9 = inlined_call_operand.hbm [shape: f32[1,8,128], index: 9, kind: output, shape index: {}]
  %s10 = sld [smem:[#allocation0]]
  $region70: #{tpu_custom_call.1} parent=0
    _
  %s12 = ssub.s32 1, %s10
  %s13 = scalar_select 0, %s12, %s10
  $region1: #{tpu_custom_call.1} parent=0
    #allocation2 [shape = 'u8[4096]{0}', space=vmem, size = 0x1000, scoped, tag = 'input window, operand 0, single buffered']
    #allocation3 [shape = 's32[1]{0}', space=sflag, size = 0x4, scoped, tag = 'scoped memory for tpu_custom_call.1']
    #allocation4 [shape = 's32[1]{0}', space=sflag, size = 0x4, scoped, tag = 'scoped memory for tpu_custom_call.1']
    #allocation5 [shape = 'u8[4096]{0}', space=vmem, size = 0x1000, scoped, tag = 'input window, operand 1, single buffered']
    #allocation6 [shape = 's32[1]{0}', space=sflag, size = 0x4, scoped, tag = 'scoped memory for tpu_custom_call.1']
    #allocation7 [shape = 'u8[4096]{0}', space=vmem, size = 0x1000, scoped, tag = 'input window, operand 2, single buffered']
    #allocation8 [shape = 'u8[4096]{0}', space=vmem, size = 0x1000, scoped, tag = 'input window, operand 4, single buffered']
    #allocation9 [shape = 's32[1]{0}', space=sflag, size = 0x4, scoped, tag = 'scoped memory for tpu_custom_call.1']
    #allocation10 [shape = 'u8[4096]{0}', space=vmem, size = 0x1000, scoped, tag = 'input window, operand 6, single buffered']
    #allocation11 [shape = 'u8[4096]{0}', space=vmem, size = 0x1000, scoped, tag = 'input window, operand 8, single buffered']
    #allocation12 [shape = 's32[1]{0}', space=sflag, size = 0x4, scoped, tag = 'scoped memory for tpu_custom_call.1']
    #allocation13 [shape = 'u8[4096]{0}', space=vmem, size = 0x1000, scoped, tag = 'output window, operand 0, single buffered']
    %14 = vsyncpa [#allocation3], 0
    %15 = vsyncpa [#allocation6], 0
    %16 = vsyncpa [#allocation9], 0
    %17 = vsyncpa [#allocation12], 0
    %18 = vsyncpa [#allocation4], 0
    // Predicated region
    $region2: #{tpu_custom_call.1} parent=1 // pred_check
      _
    $region3: #{tpu_custom_call.1} parent=1 // pred_check_branch
      %20 = sbr.rel (0) target = $region5
    $region4: #{tpu_custom_call.1} parent=1 // pred_region
      %s22 = ssub.s32 128, 128
      %23 = vsyncadd [#allocation3], %s22
      %s25 = sshll.u32 [#allocation2], 4
      %s26 = int_to_ptr.vmem [resolvable:$true] %s25
      %28 = dma.hbm_to_vmem [thread:$0]  %s0, 128, %s26, [#allocation3]
    $region5: #{tpu_custom_call.1} parent=1 // pred_fallthru
      _
    // Predicated region
    $region6: #{tpu_custom_call.1} parent=1 // pred_check
      _
    $region7: #{tpu_custom_call.1} parent=1 // pred_check_branch
      %30 = sbr.rel (0) target = $region9
    $region8: #{tpu_custom_call.1} parent=1 // pred_region
      %s32 = ssub.s32 128, 128
      %33 = vsyncadd [#allocation6], %s32
      %s35 = sshll.u32 [#allocation5], 4
      %s36 = int_to_ptr.vmem [resolvable:$true] %s35
      %38 = dma.hbm_to_vmem [thread:$0]  %s1, 128, %s36, [#allocation6]
    $region9: #{tpu_custom_call.1} parent=1 // pred_fallthru
      _
    // Predicated region
    $region10: #{tpu_custom_call.1} parent=1 // pred_check
      _
    $region11: #{tpu_custom_call.1} parent=1 // pred_check_branch
      %40 = sbr.rel (0) target = $region13
    $region12: #{tpu_custom_call.1} parent=1 // pred_region
      %s42 = ssub.s32 128, 128
      %43 = vsyncadd [#allocation6], %s42
      %s45 = sshll.u32 [#allocation7], 4
      %s46 = int_to_ptr.vmem [resolvable:$true] %s45
      %48 = dma.hbm_to_vmem [thread:$0]  %s2, 128, %s46, [#allocation6]
    $region13: #{tpu_custom_call.1} parent=1 // pred_fallthru
      _
    // Predicated region
    $region14: #{tpu_custom_call.1} parent=1 // pred_check
      _
    $region15: #{tpu_custom_call.1} parent=1 // pred_check_branch
      %50 = sbr.rel (0) target = $region17
    $region16: #{tpu_custom_call.1} parent=1 // pred_region
      _
    $region17: #{tpu_custom_call.1} parent=1 // pred_fallthru
      _
    // Predicated region
    $region18: #{tpu_custom_call.1} parent=1 // pred_check
      _
    $region19: #{tpu_custom_call.1} parent=1 // pred_check_branch
      %52 = sbr.rel (0) target = $region21
    $region20: #{tpu_custom_call.1} parent=1 // pred_region
      %s54 = ssub.s32 128, 128
      %55 = vsyncadd [#allocation9], %s54
      %s57 = sshll.u32 [#allocation8], 4
      %s58 = int_to_ptr.vmem [resolvable:$true] %s57
      %60 = dma.hbm_to_vmem [thread:$0]  %s4, 128, %s58, [#allocation9]
    $region21: #{tpu_custom_call.1} parent=1 // pred_fallthru
      _
    // Predicated region
    $region22: #{tpu_custom_call.1} parent=1 // pred_check
      _
    $region23: #{tpu_custom_call.1} parent=1 // pred_check_branch
      %62 = sbr.rel (0) target = $region25
    $region24: #{tpu_custom_call.1} parent=1 // pred_region
      _
    $region25: #{tpu_custom_call.1} parent=1 // pred_fallthru
      _
    // Predicated region
    $region26: #{tpu_custom_call.1} parent=1 // pred_check
      _
    $region27: #{tpu_custom_call.1} parent=1 // pred_check_branch
      %64 = sbr.rel (0) target = $region29
    $region28: #{tpu_custom_call.1} parent=1 // pred_region
      %s66 = ssub.s32 128, 128
      %67 = vsyncadd [#allocation9], %s66
      %s69 = sshll.u32 [#allocation10], 4
      %s70 = int_to_ptr.vmem [resolvable:$true] %s69
      %72 = dma.hbm_to_vmem [thread:$0]  %s6, 128, %s70, [#allocation9]
    $region29: #{tpu_custom_call.1} parent=1 // pred_fallthru
      _
    // Predicated region
    $region30: #{tpu_custom_call.1} parent=1 // pred_check
      _
    $region31: #{tpu_custom_call.1} parent=1 // pred_check_branch
      %74 = sbr.rel (0) target = $region33
    $region32: #{tpu_custom_call.1} parent=1 // pred_region
      _
    $region33: #{tpu_custom_call.1} parent=1 // pred_fallthru
      _
    // Predicated region
    $region34: #{tpu_custom_call.1} parent=1 // pred_check
      _
    $region35: #{tpu_custom_call.1} parent=1 // pred_check_branch
      %76 = sbr.rel (0) target = $region37
    $region36: #{tpu_custom_call.1} parent=1 // pred_region
      %s78 = ssub.s32 128, 128
      %79 = vsyncadd [#allocation12], %s78
      %s81 = sshll.u32 [#allocation11], 4
      %s82 = int_to_ptr.vmem [resolvable:$true] %s81
      %84 = dma.hbm_to_vmem [thread:$0]  %s8, 128, %s82, [#allocation12]
    $region37: #{tpu_custom_call.1} parent=1 // pred_fallthru
      _
    // Predicated region
    $region38: #{tpu_custom_call.1} parent=1 // pred_check
      _
    $region39: #{tpu_custom_call.1} parent=1 // pred_check_branch
      %86 = sbr.rel (0) target = $region41
    $region40: #{tpu_custom_call.1} parent=1 // pred_region
      %87 = dma.done [#allocation3], 128
    $region41: #{tpu_custom_call.1} parent=1 // pred_fallthru
      _
    // Predicated region
    $region42: #{tpu_custom_call.1} parent=1 // pred_check
      _
    $region43: #{tpu_custom_call.1} parent=1 // pred_check_branch
      %89 = sbr.rel (0) target = $region45
    $region44: #{tpu_custom_call.1} parent=1 // pred_region
      %90 = dma.done [#allocation6], 128
    $region45: #{tpu_custom_call.1} parent=1 // pred_fallthru
      _
    // Predicated region
    $region46: #{tpu_custom_call.1} parent=1 // pred_check
      _
    $region47: #{tpu_custom_call.1} parent=1 // pred_check_branch
      %92 = sbr.rel (0) target = $region49
    $region48: #{tpu_custom_call.1} parent=1 // pred_region
      %93 = dma.done [#allocation6], 128
    $region49: #{tpu_custom_call.1} parent=1 // pred_fallthru
      _
    // Predicated region
    $region50: #{tpu_custom_call.1} parent=1 // pred_check
      _
    $region51: #{tpu_custom_call.1} parent=1 // pred_check_branch
      %95 = sbr.rel (0) target = $region53
    $region52: #{tpu_custom_call.1} parent=1 // pred_region
      %96 = dma.done [#allocation9], 128
    $region53: #{tpu_custom_call.1} parent=1 // pred_fallthru
      _
    // Predicated region
    $region54: #{tpu_custom_call.1} parent=1 // pred_check
      _
    $region55: #{tpu_custom_call.1} parent=1 // pred_check_branch
      %98 = sbr.rel (0) target = $region57
    $region56: #{tpu_custom_call.1} parent=1 // pred_region
      %99 = dma.done [#allocation9], 128
    $region57: #{tpu_custom_call.1} parent=1 // pred_fallthru
      _
    // Predicated region
    $region58: #{tpu_custom_call.1} parent=1 // pred_check
      _
    $region59: #{tpu_custom_call.1} parent=1 // pred_check_branch
      %101 = sbr.rel (0) target = $region61
    $region60: #{tpu_custom_call.1} parent=1 // pred_region
      %102 = dma.done [#allocation12], 128
    $region61: #{tpu_custom_call.1} parent=1 // pred_fallthru
      _
    %v103 = vld [vmem:[#allocation2] sm:$0xff]
    %v104 = vld [vmem:[%s3] sm:$0xff]
    %v105 = vld [vmem:[#allocation10] sm:$0xff]
    %v106 = vld [vmem:[#allocation5] sm:$0xff]
    %v107 = vsub.f32 %v103, %v106
    %v108 = vadd.f32 %v107, 1e-06
    %v109 = vmul.f32 %v108, %v108
    %vm110 = vcmask 261120
    %v111 = vsel %vm110, %v109, 0.0
    %112 = vadd.xlane.f32.xlu0 %v111
    %v113 = vpop.xlane.xlu0 %112
    %v114 = vrsqrt.pop %v113
    %v115 = vmul.f32 %v113, %v114
    %vm116 = vcmp.eq.f32.partialorder %v113, inf
    %v117 = vsel %vm116, %v113, %v115
    %vm118 = vcmp.eq.f32.partialorder %v113, 0.0
    %v119 = vand.u32 %v113, 2147483648
    %v120 = vsel %vm118, %v119, %v117
    %v121 = vld [vmem:[#allocation7] sm:$0xff]
    %v122 = vsub.f32 %v103, %v121
    %v123 = vadd.f32 %v122, 1e-06
    %v124 = vmul.f32 %v123, %v123
    %v125 = vsel %vm110, %v124, 0.0
    %126 = vadd.xlane.f32.xlu0 %v125
    %v127 = vpop.xlane.xlu0 %126
    %v128 = vrsqrt.pop %v127
    %v129 = vmul.f32 %v127, %v128
    %vm130 = vcmp.eq.f32.partialorder %v127, inf
    %v131 = vsel %vm130, %v127, %v129
    %vm132 = vcmp.eq.f32.partialorder %v127, 0.0
    %v133 = vand.u32 %v127, 2147483648
    %v134 = vsel %vm132, %v133, %v131
    %v135 = vsub.f32 %v120, %v134
    %v136 = vadd.f32 %v135, 1.0
    %v137 = vmax.f32 %v136, 0.0
    %v138 = vld [vmem:[#allocation8] sm:$0xff]
    %v139 = vsub.f32 %v104, %v138
    %v140 = vadd.f32 %v139, 1e-06
    %v141 = vmul.f32 %v140, %v140
    %v142 = vsel %vm110, %v141, 0.0
    %143 = vadd.xlane.f32.xlu0 %v142
    %v144 = vpop.xlane.xlu0 %143
    %v145 = vrsqrt.pop %v144
    %v146 = vmul.f32 %v144, %v145
    %vm147 = vcmp.eq.f32.partialorder %v144, inf
    %v148 = vsel %vm147, %v144, %v146
    %vm149 = vcmp.eq.f32.partialorder %v144, 0.0
    %v150 = vand.u32 %v144, 2147483648
    %v151 = vsel %vm149, %v150, %v148
    %v152 = vld [vmem:[%s5] sm:$0xff]
    %v153 = vsub.f32 %v104, %v152
    %v154 = vadd.f32 %v153, 1e-06
    %v155 = vmul.f32 %v154, %v154
    %v156 = vsel %vm110, %v155, 0.0
    %157 = vadd.xlane.f32.xlu0 %v156
    %v158 = vpop.xlane.xlu0 %157
    %v159 = vrsqrt.pop %v158
    %v160 = vmul.f32 %v158, %v159
    %vm161 = vcmp.eq.f32.partialorder %v158, inf
    %v162 = vsel %vm161, %v158, %v160
    %vm163 = vcmp.eq.f32.partialorder %v158, 0.0
    %v164 = vand.u32 %v158, 2147483648
    %v165 = vsel %vm163, %v164, %v162
    %v166 = vsub.f32 %v151, %v165
    %v167 = vadd.f32 %v166, 1.0
    %v168 = vmax.f32 %v167, 0.0
    %v169 = vld [vmem:[%s7] sm:$0xff]
    %v170 = vsub.f32 %v105, %v169
    %v171 = vadd.f32 %v170, 1e-06
    %v172 = vmul.f32 %v171, %v171
    %v173 = vsel %vm110, %v172, 0.0
    %174 = vadd.xlane.f32.xlu0 %v173
    %v175 = vpop.xlane.xlu0 %174
    %v176 = vrsqrt.pop %v175
    %v177 = vmul.f32 %v175, %v176
    %vm178 = vcmp.eq.f32.partialorder %v175, inf
    %v179 = vsel %vm178, %v175, %v177
    %vm180 = vcmp.eq.f32.partialorder %v175, 0.0
    %v181 = vand.u32 %v175, 2147483648
    %v182 = vsel %vm180, %v181, %v179
    %v183 = vld [vmem:[#allocation11] sm:$0xff]
    %v184 = vsub.f32 %v105, %v183
    %v185 = vadd.f32 %v184, 1e-06
    %v186 = vmul.f32 %v185, %v185
    %v187 = vsel %vm110, %v186, 0.0
    %188 = vadd.xlane.f32.xlu0 %v187
    %v189 = vpop.xlane.xlu0 %188
    %v190 = vrsqrt.pop %v189
    %v191 = vmul.f32 %v189, %v190
    %vm192 = vcmp.eq.f32.partialorder %v189, inf
    %v193 = vsel %vm192, %v189, %v191
    %vm194 = vcmp.eq.f32.partialorder %v189, 0.0
    %v195 = vand.u32 %v189, 2147483648
    %v196 = vsel %vm194, %v195, %v193
    %v197 = vsub.f32 %v182, %v196
    %v198 = vadd.f32 %v197, 1.0
    %v199 = vmax.f32 %v198, 0.0
    %v200 = vadd.f32 %v137, %v168
    %v201 = vadd.f32 %v200, %v199
    %vm202 = vcmask 7168
    %v203 = vsel %vm202, %v201, 0.0
    %204 = vadd.xlane.f32.xlu0 %v203
    %v205 = vpop.xlane.xlu0 %204
    %v206 = vrot.slane %v205, 4
    %v207 = vadd.f32 %v205, %v206
    %v208 = vrot.slane %v207, 2
    %v209 = vadd.f32 %v207, %v208
    %v210 = vrot.slane %v209, 1
    %v211 = vadd.f32 %v209, %v210
    %s212 = vtos %v211
    %v213 = vstv %s212
    %214 = vst [vmem:[#allocation13] sm:$0xff] %v213
    // Predicated region
    $region62: #{tpu_custom_call.1} parent=1 // pred_check
      _
    $region63: #{tpu_custom_call.1} parent=1 // pred_check_branch
      %216 = sbr.rel (0) target = $region65
    $region64: #{tpu_custom_call.1} parent=1 // pred_region
      %s218 = ssub.s32 128, 128
      %219 = vsyncadd [#allocation4], %s218
      %s221 = sshll.u32 [#allocation13], 4
      %s222 = int_to_ptr.vmem [resolvable:$true] %s221
      %224 = dma.vmem_to_hbm [thread:$0]  %s222, 128, %s9, [#allocation4]
    $region65: #{tpu_custom_call.1} parent=1 // pred_fallthru
      _
    // Predicated region
    $region66: #{tpu_custom_call.1} parent=1 // pred_check
      _
    $region67: #{tpu_custom_call.1} parent=1 // pred_check_branch
      %226 = sbr.rel (0) target = $region69
    $region68: #{tpu_custom_call.1} parent=1 // pred_region
      %227 = dma.done [#allocation4], 128
    $region69: #{tpu_custom_call.1} parent=1 // pred_fallthru
      _
    %228 = vsyncpa [#allocation3], 1
    %229 = vsyncpa [#allocation6], 1
    %230 = vsyncpa [#allocation9], 1
    %231 = vsyncpa [#allocation12], 1
    %232 = vsyncpa [#allocation4], 1

</llo_original>
